<compile_context>
chip_gen: v5e
topology: v5e:2x2
jax: 0.10.0
libtpu: 0.0.40
codegen_flags: <defaults>
</compile_context>

<pallas_src>
import jax
import jax.numpy as jnp
from jax.experimental import pallas as pl
from jax.experimental.pallas import tpu as pltpu


def _round_up(a, b):
    return (a + b - 1) // b * b


def _maybe_pad(arr, target_shape):
    pads = tuple((0, t - s) for s, t in zip(arr.shape, target_shape))
    if all(p == (0, 0) for p in pads):
        return arr
    return jnp.pad(arr, pads)


def _vmem_bytes(tm, th, dim_p, x_isz, w_isz, out_isz, use_scratch):
    """Double-buffered working-set estimate (now counts h and the out dtype)."""
    x_tile = tm * dim_p * x_isz * 2           # x row tile, double-buffered
    o_tile = tm * dim_p * out_isz * 2         # out tile, double-buffered
    w1_tile = dim_p * th * w_isz * 2          # W1 hidden chunk
    w2_tile = th * dim_p * w_isz * 2          # W2 hidden chunk
    b1_tile = th * 4 * 2
    b2_tile = dim_p * 4 * 2
    h_tile = tm * th * 4                      # f32 intermediate h between dots
    h_cast = tm * th * w_isz if w_isz < 4 else 0   # bf16 cast copy of h
    acc = tm * dim_p * 4 if use_scratch else 0     # separate f32 accumulator
    return (x_tile + o_tile + w1_tile + w2_tile + b1_tile + b2_tile
            + h_tile + h_cast + acc)


def _vmem_policy():
    """(budget_bytes, vmem_limit_cap_bytes, multi_tensorcore) per generation."""
    cap = None
    try:
        info = pltpu.get_tpu_info()
        cap = int(getattr(info, "vmem_capacity_bytes", 0)) or None
    except Exception:
        cap = None
    if cap is None:
        cap = 64 << 20                      # unknown: assume smallest (v7x-class) VMEM
    if cap >= (100 << 20):                  # v5e / v6e: 128 MiB physical per TC
        return 96 << 20, 120 << 20, False
    # v7x-class: 64 MiB per TC, 2 TCs per chip; leave headroom for compiler scratch.
    return 40 << 20, 56 << 20, True


def _make_kernel(compute_dtype, use_scratch):
    def _partial_product(x_ref, w1_ref, b1_ref, w2_ref):
        x = x_ref[...].astype(compute_dtype)           # per-tile cast, hidden under MXU
        h = jnp.dot(x, w1_ref[...], preferred_element_type=jnp.float32)
        h = jnp.maximum(h + b1_ref[...], 0.0)
        # TODO(synk): nn.Dropout with p > 0 would need pltpu.prng_random_bits
        # masking here; the module default p=0.0 (and eval mode) is the identity.
        return jnp.dot(h.astype(compute_dtype), w2_ref[...],
                       preferred_element_type=jnp.float32)

    if use_scratch:
        def kernel(x_ref, w1_ref, b1_ref, w2_ref, b2_ref, o_ref, acc_ref):
            j = pl.program_id(1)
            part = _partial_product(x_ref, w1_ref, b1_ref, w2_ref)

            @pl.when(j == 0)
            def _():                       # fold init into first partial product
                acc_ref[...] = part

            @pl.when(j > 0)
            def _():
                acc_ref[...] += part

            @pl.when(j == pl.num_programs(1) - 1)
            def _():
                o_ref[...] = (acc_ref[...] + b2_ref[...]).astype(o_ref.dtype)
    else:
        # f32 output: accumulate directly into the VMEM-resident output block.
        def kernel(x_ref, w1_ref, b1_ref, w2_ref, b2_ref, o_ref):
            j = pl.program_id(1)
            part = _partial_product(x_ref, w1_ref, b1_ref, w2_ref)

            @pl.when(j == 0)
            def _():
                o_ref[...] = part

            @pl.when(j > 0)
            def _():
                o_ref[...] += part

            @pl.when(j == pl.num_programs(1) - 1)
            def _():
                o_ref[...] += b2_ref[...]

    return kernel


def feed_forward(x, w1, b1, w2, b2, *, tm=None, th=None,
                 compute_dtype=jnp.bfloat16):
    """x: (batch, seq, dim). w1: (dim, hidden), b1: (hidden,),
    w2: (hidden, dim), b2: (dim,).  Weights are the transposed (in, out) form
    of PyTorch nn.Linear's (out, in) layout."""
    batch, seq, dim = x.shape
    hidden = w1.shape[1]
    out_dtype = x.dtype
    M = batch * seq

    cdt = jnp.dtype(compute_dtype)
    x_isz = jnp.dtype(x.dtype).itemsize
    w_isz = cdt.itemsize
    out_isz = jnp.dtype(out_dtype).itemsize

    # Accumulate in-place in the output block when it is f32; otherwise use an
    # f32 VMEM scratch accumulator and cast only at finalize.
    use_scratch = jnp.dtype(out_dtype) != jnp.dtype(jnp.float32)

    budget, limit_cap, multi_tc = _vmem_policy()

    align_m = 16 if w_isz <= 2 else 8       # bf16 sublane packing for h / x casts
    dim_p = _round_up(dim, 128)             # lane-dense feature dim

    # Tile ladder: larger row tiles for narrower MXU dtypes.
    if tm is None:
        tm = 1024 if w_isz <= 2 else 512
    tm = min(_round_up(tm, align_m), _round_up(M, align_m))
    if th is None:
        th = 1024 if w_isz <= 2 else 512
    th = min(_round_up(th, 128), _round_up(hidden, 128))

    # Shrink tiles until the (correctly counted) working set fits the budget.
    while _vmem_bytes(tm, th, dim_p, x_isz, w_isz, out_isz, use_scratch) > budget:
        if th > 256:
            th = _round_up(th // 2, 256)
        elif tm > 512:
            tm = _round_up(tm // 2, align_m)
        elif th > 128:
            th = 128
        elif tm > align_m:
            tm = _round_up(tm // 2, align_m)
        else:
            break

    # On multi-TensorCore chips (v7x-class) make sure the "parallel" row axis
    # has at least 2 tiles so both cores get work.
    if multi_tc and _round_up(M, tm) // tm < 2:
        half = _round_up(max((M + 1) // 2, align_m), align_m)
        if half < tm:
            tm = half

    M_p = _round_up(M, tm)
    hid_p = _round_up(hidden, th)

    # Zero-pad to tile-aligned, lane-dense shapes (no-op when already aligned).
    # Zero pads are exact: padded W1 cols / b1 entries give h = ReLU(0) = 0,
    # padded W2 rows contribute 0; padded rows/cols are sliced away below.
    # x keeps its original dtype; the compute-dtype cast happens in-kernel.
    x2d = _maybe_pad(x.reshape(M, dim), (M_p, dim_p))
    w1c = _maybe_pad(w1.astype(cdt), (dim_p, hid_p))
    w2c = _maybe_pad(w2.astype(cdt), (hid_p, dim_p))
    b1p = _maybe_pad(b1.astype(jnp.float32).reshape(1, hidden), (1, hid_p))
    b2p = _maybe_pad(b2.astype(jnp.float32).reshape(1, dim), (1, dim_p))

    grid = (M_p // tm, hid_p // th)

    need = _vmem_bytes(tm, th, dim_p, x_isz, w_isz, out_isz, use_scratch)
    vmem_limit = int(min(max(need + (16 << 20), 32 << 20), limit_cap))

    flops = int(4 * M_p * dim_p * hid_p)                       # two matmuls
    bytes_accessed = int(M_p * dim_p * (x_isz + out_isz)
                         + 2 * dim_p * hid_p * w_isz
                         + (hid_p + dim_p) * 4)

    scratch_shapes = ([pltpu.VMEM((tm, dim_p), jnp.float32)]
                      if use_scratch else [])

    out = pl.pallas_call(
        _make_kernel(cdt, use_scratch),
        out_shape=jax.ShapeDtypeStruct((M_p, dim_p), out_dtype),
        grid_spec=pltpu.PrefetchScalarGridSpec(
            num_scalar_prefetch=0,
            grid=grid,
            in_specs=[
                pl.BlockSpec((tm, dim_p), lambda i, j: (i, 0)),    # x row tile
                pl.BlockSpec((dim_p, th), lambda i, j: (0, j)),    # W1 hidden chunk
                pl.BlockSpec((1, th),     lambda i, j: (0, j)),    # b1 chunk
                pl.BlockSpec((th, dim_p), lambda i, j: (j, 0)),    # W2 hidden chunk
                pl.BlockSpec((1, dim_p),  lambda i, j: (0, 0)),    # b2
            ],
            out_specs=pl.BlockSpec((tm, dim_p), lambda i, j: (i, 0)),
            scratch_shapes=scratch_shapes,
        ),
        compiler_params=pltpu.CompilerParams(
            dimension_semantics=("parallel", "arbitrary"),
            vmem_limit_bytes=vmem_limit,
        ),
        cost_estimate=pl.CostEstimate(
            flops=flops, transcendentals=0, bytes_accessed=bytes_accessed),
    )(x2d, w1c, b1p, w2c, b2p)

    return out[:M, :dim].reshape(batch, seq, dim)


if __name__ == "__main__":
    # Small shapes: batch=2, seq=8, dim=32, hidden=64
    batch, seq, dim, hidden = 2, 8, 32, 64
    key = jax.random.PRNGKey(0)
    kx, kw1, kb1, kw2, kb2 = jax.random.split(key, 5)

    x = jax.random.normal(kx, (batch, seq, dim), dtype=jnp.float32)

    # Deterministic param init, mimicking nn.Linear's uniform(-1/sqrt(fan_in), ...).
    bound1 = 1.0 / jnp.sqrt(dim)
    w1 = jax.random.uniform(kw1, (dim, hidden), jnp.float32, -bound1, bound1)
    b1 = jax.random.uniform(kb1, (hidden,), jnp.float32, -bound1, bound1)
    bound2 = 1.0 / jnp.sqrt(hidden)
    w2 = jax.random.uniform(kw2, (hidden, dim), jnp.float32, -bound2, bound2)
    b2 = jax.random.uniform(kb2, (dim,), jnp.float32, -bound2, bound2)

    ref = jnp.maximum(x @ w1 + b1, 0.0) @ w2 + b2

    # f32 MXU operands: tight tolerance; exercises the in-place (no-scratch) path.
    out_f32 = jax.block_until_ready(
        feed_forward(x, w1, b1, w2, b2, compute_dtype=jnp.float32))
    assert out_f32.shape == (batch, seq, dim)
    assert jnp.allclose(out_f32, ref, atol=1e-5, rtol=1e-5), "f32 mismatch vs reference"

    # Default path: bf16 MXU operands, f32 accumulation, f32 output.
    out_bf16 = jax.block_until_ready(feed_forward(x, w1, b1, w2, b2))
    assert jnp.allclose(out_bf16, ref, atol=5e-2, rtol=5e-2), \
        "bf16-compute mismatch vs reference"

    # bf16 activations/output: exercises the f32 scratch-accumulator path.
    out_bf16_io = jax.block_until_ready(
        feed_forward(x.astype(jnp.bfloat16), w1, b1, w2, b2))
    assert out_bf16_io.dtype == jnp.bfloat16
    assert jnp.allclose(out_bf16_io.astype(jnp.float32), ref, atol=1e-1, rtol=1e-1), \
        "bf16-io mismatch vs reference"

    print("KERNEL_OK")
</pallas_src>

<mosaic_0001>
module attributes {stable_mosaic.version = 11 : i64} {
  func.func @kernel(%arg0: i32, %arg1: i32, %arg2: memref<8x128xf32, #tpu.memory_space<vmem>>, %arg3: memref<128x128xf32, #tpu.memory_space<vmem>>, %arg4: memref<1x128xf32, #tpu.memory_space<vmem>>, %arg5: memref<128x128xf32, #tpu.memory_space<vmem>>, %arg6: memref<1x128xf32, #tpu.memory_space<vmem>>, %arg7: memref<8x128xf32, #tpu.memory_space<vmem>>) attributes {dimension_semantics = [#tpu.dimension_semantics<parallel>, #tpu.dimension_semantics<arbitrary>], iteration_bounds = array<i64: 2, 1>, scalar_prefetch = 0 : i64, scratch_operands = 0 : i64, tpu.core_type = #tpu.core_type<tc>, window_params = [{transform_indices = @transform_0, window_bounds = array<i64: 8, 128>}, {transform_indices = @transform_1, window_bounds = array<i64: 128, 128>}, {transform_indices = @transform_2, window_bounds = array<i64: 1, 128>}, {transform_indices = @transform_3, window_bounds = array<i64: 128, 128>}, {pipeline_mode = #tpu.pipeline_mode<synchronous>, transform_indices = @transform_4, window_bounds = array<i64: 1, 128>}, {transform_indices = @transform_5, window_bounds = array<i64: 8, 128>}]} {
    %c0 = arith.constant 0 : index
    %c0_0 = arith.constant 0 : index
    %0 = vector.load %arg2[%c0, %c0_0] : memref<8x128xf32, #tpu.memory_space<vmem>>, vector<8x128xf32>
    %c0_1 = arith.constant 0 : index
    %c0_2 = arith.constant 0 : index
    %1 = vector.load %arg3[%c0_1, %c0_2] : memref<128x128xf32, #tpu.memory_space<vmem>>, vector<128x128xf32>
    %cst = arith.constant dense<0.000000e+00> : vector<8x128xf32>
    %2 = tpu.matmul %0, %1, %cst {dimension_numbers = #tpu.dot_dimension_numbers<[1], [0], [0], [1], [0, 0, 1, 1], [], []>} : vector<8x128xf32>, vector<128x128xf32>, vector<8x128xf32> -> vector<8x128xf32>
    %c0_3 = arith.constant 0 : index
    %c0_4 = arith.constant 0 : index
    %3 = vector.load %arg4[%c0_3, %c0_4] : memref<1x128xf32, #tpu.memory_space<vmem>>, vector<1x128xf32>
    %4 = vector.broadcast %3 : vector<1x128xf32> to vector<8x128xf32>
    %5 = arith.addf %2, %4 : vector<8x128xf32>
    %cst_5 = arith.constant 0.000000e+00 : f32
    %6 = vector.broadcast %cst_5 : f32 to vector<8x128xf32>
    %7 = arith.maximumf %5, %6 : vector<8x128xf32>
    %c0_6 = arith.constant 0 : index
    %c0_7 = arith.constant 0 : index
    %8 = vector.load %arg5[%c0_6, %c0_7] : memref<128x128xf32, #tpu.memory_space<vmem>>, vector<128x128xf32>
    %cst_8 = arith.constant dense<0.000000e+00> : vector<8x128xf32>
    %9 = tpu.matmul %7, %8, %cst_8 {dimension_numbers = #tpu.dot_dimension_numbers<[1], [0], [0], [1], [0, 0, 1, 1], [], []>} : vector<8x128xf32>, vector<128x128xf32>, vector<8x128xf32> -> vector<8x128xf32>
    %c0_i32 = arith.constant 0 : i32
    %10 = arith.cmpi eq, %arg1, %c0_i32 : i32
    %11 = arith.extui %10 : i1 to i32
    %c0_i32_9 = arith.constant 0 : i32
    %12 = arith.cmpi ne, %11, %c0_i32_9 : i32
    scf.if %12 {
      %c0_14 = arith.constant 0 : index
      %c0_15 = arith.constant 0 : index
      %19 = vector.load %arg7[%c0_14, %c0_15] : memref<8x128xf32, #tpu.memory_space<vmem>>, vector<8x128xf32>
      tpu.vector_store %arg7[%c0_14, %c0_15], %9 {strides = array<i32>} : memref<8x128xf32, #tpu.memory_space<vmem>>, vector<8x128xf32>,
    } else {
    }
    %c0_i32_10 = arith.constant 0 : i32
    %13 = arith.cmpi sgt, %arg1, %c0_i32_10 : i32
    %14 = arith.extui %13 : i1 to i32
    %c0_i32_11 = arith.constant 0 : i32
    %15 = arith.cmpi ne, %14, %c0_i32_11 : i32
    scf.if %15 {
      %c0_14 = arith.constant 0 : index
      %c0_15 = arith.constant 0 : index
      %19 = vector.load %arg7[%c0_14, %c0_15] : memref<8x128xf32, #tpu.memory_space<vmem>>, vector<8x128xf32>
      %20 = arith.addf %19, %9 : vector<8x128xf32>
      %c0_16 = arith.constant 0 : index
      %c0_17 = arith.constant 0 : index
      %21 = vector.load %arg7[%c0_16, %c0_17] : memref<8x128xf32, #tpu.memory_space<vmem>>, vector<8x128xf32>
      tpu.vector_store %arg7[%c0_16, %c0_17], %20 {strides = array<i32>} : memref<8x128xf32, #tpu.memory_space<vmem>>, vector<8x128xf32>,
    } else {
    }
    %c0_i32_12 = arith.constant 0 : i32
    %16 = arith.cmpi eq, %arg1, %c0_i32_12 : i32
    %17 = arith.extui %16 : i1 to i32
    %c0_i32_13 = arith.constant 0 : i32
    %18 = arith.cmpi ne, %17, %c0_i32_13 : i32
    scf.if %18 {
      %c0_14 = arith.constant 0 : index
      %c0_15 = arith.constant 0 : index
      %19 = vector.load %arg7[%c0_14, %c0_15] : memref<8x128xf32, #tpu.memory_space<vmem>>, vector<8x128xf32>
      %c0_16 = arith.constant 0 : index
      %c0_17 = arith.constant 0 : index
      %20 = vector.load %arg6[%c0_16, %c0_17] : memref<1x128xf32, #tpu.memory_space<vmem>>, vector<1x128xf32>
      %21 = vector.broadcast %20 : vector<1x128xf32> to vector<8x128xf32>
      %22 = arith.addf %19, %21 : vector<8x128xf32>
      %c0_18 = arith.constant 0 : index
      %c0_19 = arith.constant 0 : index
      %23 = vector.load %arg7[%c0_18, %c0_19] : memref<8x128xf32, #tpu.memory_space<vmem>>, vector<8x128xf32>
      tpu.vector_store %arg7[%c0_18, %c0_19], %22 {strides = array<i32>} : memref<8x128xf32, #tpu.memory_space<vmem>>, vector<8x128xf32>,
    } else {
    }
    return
  }
  func.func @transform_0(%arg0: i32, %arg1: i32) -> (i32, i32) {
    %c0_i32 = arith.constant 0 : i32
    %c0_i32_0 = arith.constant 0 : i32
    return %arg0, %c0_i32 : i32, i32
  }
  func.func @transform_1(%arg0: i32, %arg1: i32) -> (i32, i32) {
    %c0_i32 = arith.constant 0 : i32
    %c0_i32_0 = arith.constant 0 : i32
    return %c0_i32, %arg1 : i32, i32
  }
  func.func @transform_2(%arg0: i32, %arg1: i32) -> (i32, i32) {
    %c0_i32 = arith.constant 0 : i32
    %c0_i32_0 = arith.constant 0 : i32
    return %c0_i32, %arg1 : i32, i32
  }
  func.func @transform_3(%arg0: i32, %arg1: i32) -> (i32, i32) {
    %c0_i32 = arith.constant 0 : i32
    %c0_i32_0 = arith.constant 0 : i32
    return %arg1, %c0_i32 : i32, i32
  }
  func.func @transform_4(%arg0: i32, %arg1: i32) -> (i32, i32) {
    %c0_i32 = arith.constant 0 : i32
    %c0_i32_0 = arith.constant 0 : i32
    %c0_i32_1 = arith.constant 0 : i32
    return %c0_i32, %c0_i32_0 : i32, i32
  }
  func.func @transform_5(%arg0: i32, %arg1: i32) -> (i32, i32) {
    %c0_i32 = arith.constant 0 : i32
    %c0_i32_0 = arith.constant 0 : i32
    return %arg0, %c0_i32 : i32, i32
  }
}

</mosaic_0001>

<llo_original>
// kernel: tpu_custom_call.1
$region0: #{tpu_custom_call.1}
  #allocation0 [shape = 'u32[]', space=smem, size = 0x4, offset = 0x4, fixed_abs, tag = 'smem constant byte address 0x4 - core index']
  #allocation1 [shape = 'u32[72,128]{1,0:T(1,128)}', space=vmem, size = 0x9000, scoped, tag = 'internal scratch']
  %s0 = inlined_call_operand.hbm [shape: f32[16,128], index: 0, kind: input, shape index: {}]
  %s1 = inlined_call_operand.hbm [shape: f32[128,128], index: 1, kind: input, shape index: {}]
  %s2 = inlined_call_operand.vmem [shape: f32[1,128], index: 2, kind: input, shape index: {}]
  %s3 = inlined_call_operand.hbm [shape: f32[128,128], index: 3, kind: input, shape index: {}]
  %s4 = inlined_call_operand.vmem [shape: f32[1,128], index: 4, kind: input, shape index: {}]
  %s5 = inlined_call_operand.hbm [shape: f32[16,128], index: 5, kind: output, shape index: {}]
  %s6 = sld [smem:[#allocation0]]
  $region77: #{tpu_custom_call.1} parent=0
    _
  %s8 = ssub.s32 1, %s6
  %s9 = scalar_select 0, %s8, %s6
  $region1: #{tpu_custom_call.1} parent=0
    #allocation2 [shape = 'u8[8192]{0}', space=vmem, size = 0x2000, scoped, tag = 'input window, operand 0']
    #allocation3 [shape = 's32[2]{0}', space=sflag, size = 0x8, scoped, tag = 'scoped memory for tpu_custom_call.1']
    #allocation4 [shape = 's32[2]{0}', space=sflag, size = 0x8, scoped, tag = 'scoped memory for tpu_custom_call.1']
    #allocation5 [shape = 'u8[65536]{0}', space=vmem, size = 0x10000, scoped, tag = 'input window, operand 1, single buffered']
    #allocation6 [shape = 's32[1]{0}', space=sflag, size = 0x4, scoped, tag = 'scoped memory for tpu_custom_call.1']
    #allocation7 [shape = 'u8[65536]{0}', space=vmem, size = 0x10000, scoped, tag = 'input window, operand 3, single buffered']
    #allocation8 [shape = 'u8[8192]{0}', space=vmem, size = 0x2000, scoped, tag = 'output window, operand 0']
    %10 = vsyncpa [#allocation3], 0
    %s11 = scalar_lea.sflag [#allocation3], 1
    %12 = vsyncpa %s11, 0
    %13 = vsyncpa [#allocation6], 0
    %14 = vsyncpa [#allocation4], 0
    %s15 = scalar_lea.sflag [#allocation4], 1
    %16 = vsyncpa %s15, 0
    loop: start=0, step=1, limit=4
    $region2: #{tpu_custom_call.1} parent=1 // loop_pre_header
      _
    $region3: #{tpu_custom_call.1} parent=1 // loop_header
      %s18 = sphi 0, %s22
      %p19 = scmp.ge.s32.totalorder %s18, 4
      %s25 = sphi 0, %s37
      %s26 = sphi 0, %s33
      %s27 = sphi 0, %s25
      %s28 = sphi 0, %s26
      %s29 = sphi 0, %s27
      %s30 = sphi 0, %s28
      %s40 = sphi 0, %s42
      %s43 = sphi 0, %s40
      %s44 = sphi 0, %s43
      %s60 = sphi 0, %s44
      %s66 = sphi 0, %s68
      %s69 = sphi 0, %s66
      %s70 = sphi 0, %s69
      %s86 = sphi 0, %s70
      %s92 = sphi 0, %s94
      %s95 = sphi 0, %s92
      %s96 = sphi 0, %s95
      %s112 = sphi 0, %s96
      %s118 = sphi 0, %s120
      %s121 = sphi 0, %s118
      %s122 = sphi 0, %s121
      %s138 = sphi 0, %s122
      %s142 = sphi 0, %s142
      %s144 = sphi 0, %s142
      %s145 = sphi 0, %s144
      %s159 = sphi 0, %s145
      %s165 = sphi 0, %s167
      %s168 = sphi 0, %s165
      %s169 = sphi 0, %s168
      %s185 = sphi 0, %s169
    $region4: #{tpu_custom_call.1} parent=1 // loop_header_branch
      %21 = sbr.rel (%p19) target = $region8
    $region5: #{tpu_custom_call.1} parent=1 // loop_body
      %s23 = ssub.s32 %s18, 1
      %s24 = ssub.s32 %s18, 2
      %s31 = sadd.s32 1, %s26
      %p32 = scmp.ge.s32.totalorder %s31, 1
      %s33 = scalar_select %p32, 0, %s31
      %s34 = sadd.s32 1, %s25
      %s35 = scalar_select %p32, %s34, %s25
      %p36 = scmp.ge.s32.totalorder %s35, 2
      %s37 = scalar_select %p36, 0, %s35
      %s38 = ssub.s32 %s25, %s37
      %p39 = scmp.eq.s32.totalorder %s38, 0
      %s41 = sadd.s32 %s40, 1
      %s42 = scalar_select %p39, %s40, %s41
      %p45 = pneg %p39
      %p46 = scmp.eq.s32.totalorder %s18, 1
      %p47 = por %p45, %p46
      %p48 = scmp.ne.s32.totalorder %s40, %s43
      %p49 = scmp.eq.s32.totalorder %s18, 0
      %p50 = por %p48, %p49
      %p51 = scmp.ne.s32.totalorder %s40, %s43
      %p52 = scmp.eq.s32.totalorder %s23, 1
      %p53 = por %p51, %p52
      %p54 = scmp.ne.s32.totalorder %s43, %s44
      %p55 = scmp.eq.s32.totalorder %s23, 0
      %p56 = por %p54, %p55
      %p57 = scmp.ne.s32.totalorder %s43, %s44
      %p58 = scmp.eq.s32.totalorder %s24, 1
      %p59 = por %p57, %p58
      %p61 = scmp.ne.s32.totalorder %s44, %s60
      %p62 = scmp.eq.s32.totalorder %s24, 0
      %p63 = por %p61, %p62
      %s64 = ssub.s32 %s26, %s33
      %p65 = scmp.eq.s32.totalorder %s64, 0
      %s67 = sadd.s32 %s66, 1
      %s68 = scalar_select %p65, %s66, %s67
      %p71 = pneg %p65
      %p72 = scmp.eq.s32.totalorder %s18, 1
      %p73 = por %p71, %p72
      %p74 = scmp.ne.s32.totalorder %s66, %s69
      %p75 = scmp.eq.s32.totalorder %s18, 0
      %p76 = por %p74, %p75
      %p77 = scmp.ne.s32.totalorder %s66, %s69
      %p78 = scmp.eq.s32.totalorder %s23, 1
      %p79 = por %p77, %p78
      %p80 = scmp.ne.s32.totalorder %s69, %s70
      %p81 = scmp.eq.s32.totalorder %s23, 0
      %p82 = por %p80, %p81
      %p83 = scmp.ne.s32.totalorder %s69, %s70
      %p84 = scmp.eq.s32.totalorder %s24, 1
      %p85 = por %p83, %p84
      %p87 = scmp.ne.s32.totalorder %s70, %s86
      %p88 = scmp.eq.s32.totalorder %s24, 0
      %p89 = por %p87, %p88
      %s90 = ssub.s32 %s26, %s33
      %p91 = scmp.eq.s32.totalorder %s90, 0
      %s93 = sadd.s32 %s92, 1
      %s94 = scalar_select %p91, %s92, %s93
      %p97 = pneg %p91
      %p98 = scmp.eq.s32.totalorder %s18, 1
      %p99 = por %p97, %p98
      %p100 = scmp.ne.s32.totalorder %s92, %s95
      %p101 = scmp.eq.s32.totalorder %s18, 0
      %p102 = por %p100, %p101
      %p103 = scmp.ne.s32.totalorder %s92, %s95
      %p104 = scmp.eq.s32.totalorder %s23, 1
      %p105 = por %p103, %p104
      %p106 = scmp.ne.s32.totalorder %s95, %s96
      %p107 = scmp.eq.s32.totalorder %s23, 0
      %p108 = por %p106, %p107
      %p109 = scmp.ne.s32.totalorder %s95, %s96
      %p110 = scmp.eq.s32.totalorder %s24, 1
      %p111 = por %p109, %p110
      %p113 = scmp.ne.s32.totalorder %s96, %s112
      %p114 = scmp.eq.s32.totalorder %s24, 0
      %p115 = por %p113, %p114
      %s116 = ssub.s32 %s26, %s33
      %p117 = scmp.eq.s32.totalorder %s116, 0
      %s119 = sadd.s32 %s118, 1
      %s120 = scalar_select %p117, %s118, %s119
      %p123 = pneg %p117
      %p124 = scmp.eq.s32.totalorder %s18, 1
      %p125 = por %p123, %p124
      %p126 = scmp.ne.s32.totalorder %s118, %s121
      %p127 = scmp.eq.s32.totalorder %s18, 0
      %p128 = por %p126, %p127
      %p129 = scmp.ne.s32.totalorder %s118, %s121
      %p130 = scmp.eq.s32.totalorder %s23, 1
      %p131 = por %p129, %p130
      %p132 = scmp.ne.s32.totalorder %s121, %s122
      %p133 = scmp.eq.s32.totalorder %s23, 0
      %p134 = por %p132, %p133
      %p135 = scmp.ne.s32.totalorder %s121, %s122
      %p136 = scmp.eq.s32.totalorder %s24, 1
      %p137 = por %p135, %p136
      %p139 = scmp.ne.s32.totalorder %s122, %s138
      %p140 = scmp.eq.s32.totalorder %s24, 0
      %p141 = por %p139, %p140
      %s143 = sadd.s32 %s142, 1
      %p146 = scmp.eq.s32.totalorder %s18, 1
      %p147 = scmp.ne.s32.totalorder %s142, %s144
      %p148 = scmp.eq.s32.totalorder %s18, 0
      %p149 = por %p147, %p148
      %p150 = scmp.ne.s32.totalorder %s142, %s144
      %p151 = scmp.eq.s32.totalorder %s23, 1
      %p152 = por %p150, %p151
      %p153 = scmp.ne.s32.totalorder %s144, %s145
      %p154 = scmp.eq.s32.totalorder %s23, 0
      %p155 = por %p153, %p154
      %p156 = scmp.ne.s32.totalorder %s144, %s145
      %p157 = scmp.eq.s32.totalorder %s24, 1
      %p158 = por %p156, %p157
      %p160 = scmp.ne.s32.totalorder %s145, %s159
      %p161 = scmp.eq.s32.totalorder %s24, 0
      %p162 = por %p160, %p161
      %s163 = ssub.s32 %s25, %s37
      %p164 = scmp.eq.s32.totalorder %s163, 0
      %s166 = sadd.s32 %s165, 1
      %s167 = scalar_select %p164, %s165, %s166
      %p170 = pneg %p164
      %p171 = scmp.eq.s32.totalorder %s18, 1
      %p172 = por %p170, %p171
      %p173 = scmp.ne.s32.totalorder %s165, %s168
      %p174 = scmp.eq.s32.totalorder %s18, 0
      %p175 = por %p173, %p174
      %p176 = scmp.ne.s32.totalorder %s165, %s168
      %p177 = scmp.eq.s32.totalorder %s23, 1
      %p178 = por %p176, %p177
      %p179 = scmp.ne.s32.totalorder %s168, %s169
      %p180 = scmp.eq.s32.totalorder %s23, 0
      %p181 = por %p179, %p180
      %p182 = scmp.ne.s32.totalorder %s168, %s169
      %p183 = scmp.eq.s32.totalorder %s24, 1
      %p184 = por %p182, %p183
      %p186 = scmp.ne.s32.totalorder %s169, %s185
      %p187 = scmp.eq.s32.totalorder %s24, 0
      %p188 = por %p186, %p187
      %p189 = scmp.le.s32.totalorder 1, %s18
      %p190 = scmp.lt.s32.totalorder %s18, 3
      %p191 = pnand %p189, %p190
      %p192 = pneg %p191
      // Predicated region
      $region9: #{tpu_custom_call.1} parent=5 // pred_check
        _
      $region10: #{tpu_custom_call.1} parent=5 // pred_check_branch
        %194 = sbr.rel (%p191) target = $region12
      $region11: #{tpu_custom_call.1} parent=5 // pred_region
        %s195 = ssub.s32 %s18, 1
        // Predicated region
        $region13: #{tpu_custom_call.1} parent=11 // pred_check
          %p196 = pneg %p82
        $region14: #{tpu_custom_call.1} parent=11 // pred_check_branch
          %198 = sbr.rel (%p196) target = $region16
        $region15: #{tpu_custom_call.1} parent=11 // pred_region
          %200 = vsyncadd [#allocation6], 0
          %s201 = smul.addr %s28, 8
          %s202 = scalar_lea.hbm %s1, %s201
          %s203 = sshll.u32 %s202, 4
          %s204 = int_to_ptr.hbm [resolvable:$true] %s203
          %s205 = sshll.u32 [#allocation5], 4
          %s206 = int_to_ptr.vmem [resolvable:$true] %s205
          %211 = dma.hbm_to_vmem [thread:$0]  %s204, 2048, %s206, [#allocation6], 128, 128, 8
        $region16: #{tpu_custom_call.1} parent=11 // pred_fallthru
          _
        // Predicated region
        $region17: #{tpu_custom_call.1} parent=11 // pred_check
          %p212 = pneg %p108
        $region18: #{tpu_custom_call.1} parent=11 // pred_check_branch
          %214 = sbr.rel (%p212) target = $region20
        $region19: #{tpu_custom_call.1} parent=11 // pred_region
          %p215 = scmp.lt.s32.totalorder %s28, 0
          %s216 = scalar_select %p215, %s28, 0
          %s217 = scalar_lea.vmem %s2, %s216
        $region20: #{tpu_custom_call.1} parent=11 // pred_fallthru
          _
        // Predicated region
        $region21: #{tpu_custom_call.1} parent=11 // pred_check
          %p218 = pneg %p134
        $region22: #{tpu_custom_call.1} parent=11 // pred_check_branch
          %220 = sbr.rel (%p218) target = $region24
        $region23: #{tpu_custom_call.1} parent=11 // pred_region
          %s221 = smul.u32 16, %s28
          %223 = vsyncadd [#allocation6], 0
          %s224 = smul.addr %s221, 8
          %s225 = scalar_lea.hbm %s3, %s224
          %s226 = sshll.u32 %s225, 4
          %s227 = int_to_ptr.hbm [resolvable:$true] %s226
          %s228 = sshll.u32 [#allocation7], 4
          %s229 = int_to_ptr.vmem [resolvable:$true] %s228
          %234 = dma.hbm_to_vmem [thread:$0]  %s227, 2048, %s229, [#allocation6], 128, 128, 8
        $region24: #{tpu_custom_call.1} parent=11 // pred_fallthru
          _
        // Predicated region
        $region25: #{tpu_custom_call.1} parent=11 // pred_check
          %p235 = pneg %p155
        $region26: #{tpu_custom_call.1} parent=11 // pred_check_branch
          %237 = sbr.rel (%p235) target = $region28
        $region27: #{tpu_custom_call.1} parent=11 // pred_region
          _
        $region28: #{tpu_custom_call.1} parent=11 // pred_fallthru
          _
      $region12: #{tpu_custom_call.1} parent=5 // pred_fallthru
        _
      %p238 = scmp.lt.s32.totalorder %s18, 2
      // Predicated region
      $region29: #{tpu_custom_call.1} parent=5 // pred_check
        %p239 = pneg %p238
      $region30: #{tpu_custom_call.1} parent=5 // pred_check_branch
        %241 = sbr.rel (%p239) target = $region32
      $region31: #{tpu_custom_call.1} parent=5 // pred_region
        // Predicated region
        $region33: #{tpu_custom_call.1} parent=31 // pred_check
          %p242 = pneg %p50
        $region34: #{tpu_custom_call.1} parent=31 // pred_check_branch
          %244 = sbr.rel (%p242) target = $region36
        $region35: #{tpu_custom_call.1} parent=31 // pred_region
          %s245 = sand.u32 %s40, 1
          %s246 = scalar_lea.sflag [#allocation3], %s245
          %s247 = sand.u32 %s40, 1
          %s248 = smul.addr %s247, 8
          %s249 = scalar_lea.vmem [#allocation2], %s248
          %251 = vsyncadd %s246, 0
          %s252 = smul.addr %s25, 8
          %s253 = scalar_lea.hbm %s0, %s252
          %s255 = sshll.u32 %s253, 4
          %s256 = int_to_ptr.hbm [resolvable:$true] %s255
          %s257 = sshll.u32 %s249, 4
          %s258 = int_to_ptr.vmem [resolvable:$true] %s257
          %260 = dma.hbm_to_vmem [thread:$0]  %s256, 128, %s258, %s246
        $region36: #{tpu_custom_call.1} parent=31 // pred_fallthru
          _
      $region32: #{tpu_custom_call.1} parent=5 // pred_fallthru
        _
      %p261 = scmp.le.s32.totalorder 1, %s18
      %p262 = scmp.lt.s32.totalorder %s18, 3
      %p263 = pnand %p261, %p262
      %p264 = pneg %p263
      // Predicated region
      $region37: #{tpu_custom_call.1} parent=5 // pred_check
        _
      $region38: #{tpu_custom_call.1} parent=5 // pred_check_branch
        %266 = sbr.rel (%p263) target = $region40
      $region39: #{tpu_custom_call.1} parent=5 // pred_region
        %s267 = ssub.s32 %s18, 1
        %s268 = sand.u32 %s43, 1
        %s269 = scalar_lea.sflag [#allocation3], %s268
        %s270 = sand.u32 %s43, 1
        %s271 = smul.addr %s270, 8
        %s272 = scalar_lea.vmem [#allocation2], %s271
        // Predicated region
        $region41: #{tpu_custom_call.1} parent=39 // pred_check
          %p273 = pneg %p56
        $region42: #{tpu_custom_call.1} parent=39 // pred_check_branch
          %275 = sbr.rel (%p273) target = $region44
        $region43: #{tpu_custom_call.1} parent=39 // pred_region
          %277 = dma.done %s269, 128
        $region44: #{tpu_custom_call.1} parent=39 // pred_fallthru
          _
        // Predicated region
        $region45: #{tpu_custom_call.1} parent=39 // pred_check
          %p278 = pneg %p82
        $region46: #{tpu_custom_call.1} parent=39 // pred_check_branch
          %280 = sbr.rel (%p278) target = $region48
        $region47: #{tpu_custom_call.1} parent=39 // pred_region
          %282 = dma.done [#allocation6], 2048
        $region48: #{tpu_custom_call.1} parent=39 // pred_fallthru
          _
        // Predicated region
        $region49: #{tpu_custom_call.1} parent=39 // pred_check
          %p283 = pneg %p134
        $region50: #{tpu_custom_call.1} parent=39 // pred_check_branch
          %285 = sbr.rel (%p283) target = $region52
        $region51: #{tpu_custom_call.1} parent=39 // pred_region
          %287 = dma.done [#allocation6], 2048
        $region52: #{tpu_custom_call.1} parent=39 // pred_fallthru
          _
        %s288 = sand.u32 %s43, 1
        %s289 = scalar_lea.sflag [#allocation3], %s288
        %s290 = sand.u32 %s43, 1
        %s291 = smul.addr %s290, 8
        %s292 = scalar_lea.vmem [#allocation2], %s291
        %p293 = pneg %p56
        %p294 = pneg %p53
        %p295 = pneg %p82
        %p296 = pneg %p79
        %p297 = scmp.lt.s32.totalorder %s28, 0
        %s298 = scalar_select %p297, %s28, 0
        %s299 = scalar_lea.vmem %s2, %s298
        %p300 = pneg %p108
        %p301 = pneg %p105
        %p302 = pneg %p134
        %p303 = pneg %p131
        %p304 = pneg %p155
        %p305 = pneg %p152
        %p306 = pneg %p181
        %p307 = pneg %p178
        %s308 = sand.u32 %s168, 1
        %s309 = scalar_lea.sflag [#allocation4], %s308
        %s310 = sand.u32 %s168, 1
        %s311 = smul.addr %s310, 8
        %s312 = scalar_lea.vmem [#allocation8], %s311
        %p313 = scmp.lt.s32.totalorder %s28, 0
        %s314 = scalar_select %p313, %s28, 0
        %s315 = scalar_lea.vmem %s2, %s314
        %s316 = smul.u32 16, %s28
        %v317 = vld [vmem:[%s272] sm:$0xff]
        %v318 = vld [vmem:[#allocation5] sm:$0xff]
        %v319 = vld [vmem:[#allocation5 + $0x8] sm:$0xff]
        %v320 = vld [vmem:[#allocation5 + $0x10] sm:$0xff]
        %v321 = vld [vmem:[#allocation5 + $0x18] sm:$0xff]
        %v322 = vld [vmem:[#allocation5 + $0x20] sm:$0xff]
        %v323 = vld [vmem:[#allocation5 + $0x28] sm:$0xff]
        %v324 = vld [vmem:[#allocation5 + $0x30] sm:$0xff]
        %v325 = vld [vmem:[#allocation5 + $0x38] sm:$0xff]
        %v326 = vld [vmem:[#allocation5 + $0x40] sm:$0xff]
        %v327 = vld [vmem:[#allocation5 + $0x48] sm:$0xff]
        %v328 = vld [vmem:[#allocation5 + $0x50] sm:$0xff]
        %v329 = vld [vmem:[#allocation5 + $0x58] sm:$0xff]
        %v330 = vld [vmem:[#allocation5 + $0x60] sm:$0xff]
        %v331 = vld [vmem:[#allocation5 + $0x68] sm:$0xff]
        %v332 = vld [vmem:[#allocation5 + $0x70] sm:$0xff]
        %v333 = vld [vmem:[#allocation5 + $0x78] sm:$0xff]
        %v334 = vld [vmem:[%s315] sm:$0x1]
        %v336 = vperm.slane %v334, 0
        %338 = vmatpush.msra.mxu0 %v333
        %339 = vmatpush.msra.mxu0 %v332
        %340 = vmatpush.msra.mxu0 %v331
        %341 = vmatpush.msra.mxu0 %v330
        %342 = vmatpush.msra.mxu0 %v329
        %343 = vmatpush.msra.mxu0 %v328
        %344 = vmatpush.msra.mxu0 %v327
        %345 = vmatpush.msra.mxu0 %v326
        %346 = vmatpush.msra.mxu0 %v325
        %347 = vmatpush.msra.mxu0 %v324
        %348 = vmatpush.msra.mxu0 %v323
        %349 = vmatpush.msra.mxu0 %v322
        %350 = vmatpush.msra.mxu0 %v321
        %351 = vmatpush.msra.mxu0 %v320
        %352 = vmatpush.msra.mxu0 %v319
        %353 = vmatpush.msra.mxu0 %v318
        %354 = vmatmul.f32.gmra.mxu0 %v317
        %v355 = vpop.f32.mrf.mxu0
        %v356 = vadd.f32 %v336, %v355
        %357 = vdwg.mxu0
        %v358 = vmax.f32 %v356, 0.0
        %v359 = vld [vmem:[#allocation7] sm:$0xff]
        %v360 = vld [vmem:[#allocation7 + $0x8] sm:$0xff]
        %v361 = vld [vmem:[#allocation7 + $0x10] sm:$0xff]
        %v362 = vld [vmem:[#allocation7 + $0x18] sm:$0xff]
        %v363 = vld [vmem:[#allocation7 + $0x20] sm:$0xff]
        %v364 = vld [vmem:[#allocation7 + $0x28] sm:$0xff]
        %v365 = vld [vmem:[#allocation7 + $0x30] sm:$0xff]
        %v366 = vld [vmem:[#allocation7 + $0x38] sm:$0xff]
        %v367 = vld [vmem:[#allocation7 + $0x40] sm:$0xff]
        %v368 = vld [vmem:[#allocation7 + $0x48] sm:$0xff]
        %v369 = vld [vmem:[#allocation7 + $0x50] sm:$0xff]
        %v370 = vld [vmem:[#allocation7 + $0x58] sm:$0xff]
        %v371 = vld [vmem:[#allocation7 + $0x60] sm:$0xff]
        %v372 = vld [vmem:[#allocation7 + $0x68] sm:$0xff]
        %v373 = vld [vmem:[#allocation7 + $0x70] sm:$0xff]
        %v374 = vld [vmem:[#allocation7 + $0x78] sm:$0xff]
        %375 = vmatpush.msra.mxu0 %v374
        %376 = vmatpush.msra.mxu0 %v373
        %377 = vmatpush.msra.mxu0 %v372
        %378 = vmatpush.msra.mxu0 %v371
        %379 = vmatpush.msra.mxu0 %v370
        %380 = vmatpush.msra.mxu0 %v369
        %381 = vmatpush.msra.mxu0 %v368
        %382 = vmatpush.msra.mxu0 %v367
        %383 = vmatpush.msra.mxu0 %v366
        %384 = vmatpush.msra.mxu0 %v365
        %385 = vmatpush.msra.mxu0 %v364
        %386 = vmatpush.msra.mxu0 %v363
        %387 = vmatpush.msra.mxu0 %v362
        %388 = vmatpush.msra.mxu0 %v361
        %389 = vmatpush.msra.mxu0 %v360
        %390 = vmatpush.msra.mxu0 %v359
        %391 = vmatmul.f32.gmra.mxu0 %v358
        %v392 = vpop.f32.mrf.mxu0
        %v393 = vadd.f32 0.0, %v392
        %394 = vdwg.mxu0
        %p395 = scmp.eq.s32.totalorder %s28, 0
        // Predicated region
        $region53: #{tpu_custom_call.1} parent=39 // pred_check
          %p396 = pneg %p395
        $region54: #{tpu_custom_call.1} parent=39 // pred_check_branch
          %398 = sbr.rel (%p396) target = $region56
        $region55: #{tpu_custom_call.1} parent=39 // pred_region
          %399 = vst [vmem:[%s312] sm:$0xff] %v393
        $region56: #{tpu_custom_call.1} parent=39 // pred_fallthru
          _
        %p400 = scmp.gt.s32.totalorder %s28, 0
        // Predicated region
        $region57: #{tpu_custom_call.1} parent=39 // pred_check
          %p401 = pneg %p400
        $region58: #{tpu_custom_call.1} parent=39 // pred_check_branch
          %403 = sbr.rel (%p401) target = $region60
        $region59: #{tpu_custom_call.1} parent=39 // pred_region
          %v404 = vld [vmem:[%s312] sm:$0xff]
          %v405 = vadd.f32 %v404, %v393
          %406 = vst [vmem:[%s312] sm:$0xff] %v405
        $region60: #{tpu_custom_call.1} parent=39 // pred_fallthru
          _
        // Predicated region
        $region61: #{tpu_custom_call.1} parent=39 // pred_check
          %p407 = pneg %p395
        $region62: #{tpu_custom_call.1} parent=39 // pred_check_branch
          %409 = sbr.rel (%p407) target = $region64
        $region63: #{tpu_custom_call.1} parent=39 // pred_region
          %v410 = vld [vmem:[%s312] sm:$0xff]
          %v411 = vld [vmem:[%s4] sm:$0x1]
          %v413 = vperm.slane %v411, 0
          %v415 = vadd.f32 %v410, %v413
          %416 = vst [vmem:[%s312] sm:$0xff] %v415
        $region64: #{tpu_custom_call.1} parent=39 // pred_fallthru
          _
        %s417 = sand.u32 %s168, 1
        %s418 = scalar_lea.sflag [#allocation4], %s417
        %s419 = sand.u32 %s168, 1
        %s420 = smul.addr %s419, 8
        %s421 = scalar_lea.vmem [#allocation8], %s420
        // Predicated region
        $region65: #{tpu_custom_call.1} parent=39 // pred_check
          %p422 = pneg %p178
        $region66: #{tpu_custom_call.1} parent=39 // pred_check_branch
          %424 = sbr.rel (%p422) target = $region68
        $region67: #{tpu_custom_call.1} parent=39 // pred_region
          %426 = vsyncadd %s418, 0
          %s427 = smul.addr %s27, 8
          %s428 = scalar_lea.hbm %s5, %s427
          %s430 = sshll.u32 %s421, 4
          %s431 = int_to_ptr.vmem [resolvable:$true] %s430
          %s432 = sshll.u32 %s428, 4
          %s433 = int_to_ptr.hbm [resolvable:$true] %s432
          %435 = dma.vmem_to_hbm [thread:$0]  %s431, 128, %s433, %s418
        $region68: #{tpu_custom_call.1} parent=39 // pred_fallthru
          _
      $region40: #{tpu_custom_call.1} parent=5 // pred_fallthru
        _
      %p436 = scmp.le.s32.totalorder 2, %s18
      // Predicated region
      $region69: #{tpu_custom_call.1} parent=5 // pred_check
        %p437 = pneg %p436
      $region70: #{tpu_custom_call.1} parent=5 // pred_check_branch
        %439 = sbr.rel (%p437) target = $region72
      $region71: #{tpu_custom_call.1} parent=5 // pred_region
        %s440 = ssub.s32 %s18, 2
        // Predicated region
        $region73: #{tpu_custom_call.1} parent=71 // pred_check
          %p441 = pneg %p184
        $region74: #{tpu_custom_call.1} parent=71 // pred_check_branch
          %443 = sbr.rel (%p441) target = $region76
        $region75: #{tpu_custom_call.1} parent=71 // pred_region
          %s444 = sand.u32 %s169, 1
          %s445 = scalar_lea.sflag [#allocation4], %s444
          %s446 = sand.u32 %s169, 1
          %s447 = smul.addr %s446, 8
          %s448 = scalar_lea.vmem [#allocation8], %s447
          %450 = dma.done %s445, 128
        $region76: #{tpu_custom_call.1} parent=71 // pred_fallthru
          _
      $region72: #{tpu_custom_call.1} parent=5 // pred_fallthru
        _
    $region6: #{tpu_custom_call.1} parent=1 // loop_footer
      %s22 = sadd.s32 1, %s18
    $region7: #{tpu_custom_call.1} parent=1 // loop_footer_branch
      %17 = sbr.rel target = $region3
    $region8: #{tpu_custom_call.1} parent=1 // loop_exit
      _
    %451 = vsyncpa [#allocation3], 1
    %s452 = scalar_lea.sflag [#allocation3], 1
    %453 = vsyncpa %s452, 1
    %454 = vsyncpa [#allocation6], 1
    %455 = vsyncpa [#allocation4], 1
    %s456 = scalar_lea.sflag [#allocation4], 1
    %457 = vsyncpa %s456, 1

</llo_original>
